<compile_context>
chip_gen: v7x
topology: tpu7x:2x2x1
jax: 0.10.0
libtpu: 0.0.40
codegen_flags: <defaults>
</compile_context>

<pallas_src>
import functools
import math

import jax
import jax.numpy as jnp
from jax.experimental import pallas as pl
from jax.experimental.pallas import tpu as pltpu

STREAM_SIZE = 128          # lane-dense stream width
LN_EPS = 1e-5


# ============================== Pallas kernel ==============================

def _torso_kernel(ent_ref, ctx_ref, p_ref, w_ref, o_ref, *,
                  use_layer_norm, affine):
    """Fused VectorMerge(NONE): per-stream LayerNorm -> ReLU -> Linear, summed.

    p_ref rows: 0=gamma_ent, 1=beta_ent, 2=gamma_ctx, 3=beta_ctx,
                4=summed bias, 5..7 unused padding (keeps an (8,128) tile).
    w_ref: stacked (2S, out) bf16 weight, VMEM-resident across grid steps.
    """
    s = ent_ref.shape[-1]
    ent = ent_ref[...].astype(jnp.float32)          # (tile, S)
    ctx = ctx_ref[...].astype(jnp.float32)          # (tile, S)
    p = p_ref[...]                                  # (8, S) f32 — one vreg

    def _ln(x, g, b):
        # single-pass stats: one sweep for mean and mean-of-squares
        mu = jnp.mean(x, axis=-1, keepdims=True)
        ms = jnp.mean(x * x, axis=-1, keepdims=True)
        var = ms - mu * mu
        y = (x - mu) * jax.lax.rsqrt(var + LN_EPS)
        if affine:
            y = y * g + b
        return y

    if use_layer_norm:
        ent = _ln(ent, p[0:1, :], p[1:2, :])
        ctx = _ln(ctx, p[2:3, :], p[3:4, :])
    ent = jnp.maximum(ent, 0.0)
    ctx = jnp.maximum(ctx, 0.0)

    # Two K=S bf16 matmuls, f32 accumulation — no (tile, 2S) concat copy.
    y = jnp.dot(ent.astype(w_ref.dtype), w_ref[pl.ds(0, s), :],
                preferred_element_type=jnp.float32)
    y = y + jnp.dot(ctx.astype(w_ref.dtype), w_ref[pl.ds(s, s), :],
                    preferred_element_type=jnp.float32)
    y = y + p[4:5, :]                                # pre-summed bias
    o_ref[...] = y.astype(o_ref.dtype)


# ============================== wrapper ==============================

def _row_tile(n, max_tile=1024):
    """Row tile: multiple of 8 sublanes, balanced so grid has >=2 steps for
    megacore when n >= 16, and a just-over-tile n does not double the work."""
    steps = max(1, -(-n // max_tile))
    if n >= 16:
        steps = max(steps, 2)
    tile = -(-n // steps)
    tile = max(8, -(-tile // 8) * 8)
    return tile


def torso_forward(params, entities_embedding, context_embedding, *,
                  use_layer_norm=True, affine_layer_norm=True,
                  max_row_tile=1024, out_dtype=jnp.float32):
    """state_embedding = VectorMerge_NONE(entities_embedding, context_embedding)."""
    S = entities_embedding.shape[-1]
    out_dim = params["w"].shape[1]
    lead = entities_embedding.shape[:-1]

    ent2 = entities_embedding.reshape(-1, S)
    ctx2 = context_embedding.reshape(-1, S)
    n = ent2.shape[0]
    if n == 0:                                       # degenerate, nothing to do
        return jnp.zeros((*lead, out_dim), out_dtype)

    tile = _row_tile(n, max_row_tile)
    grid = pl.cdiv(n, tile)

    out = pl.pallas_call(
        functools.partial(_torso_kernel, use_layer_norm=use_layer_norm,
                          affine=affine_layer_norm),
        out_shape=jax.ShapeDtypeStruct((n, out_dim), out_dtype),   # no pad / slice
        grid=(grid,),
        in_specs=[
            pl.BlockSpec((tile, S), lambda i: (i, 0)),          # entities rows
            pl.BlockSpec((tile, S), lambda i: (i, 0)),          # context rows
            pl.BlockSpec((8, S), lambda i: (0, 0)),             # packed LN/bias params
            pl.BlockSpec((2 * S, out_dim), lambda i: (0, 0)),   # stacked weight (resident)
        ],
        out_specs=pl.BlockSpec((tile, out_dim), lambda i: (i, 0)),
        compiler_params=pltpu.CompilerParams(
            dimension_semantics=("parallel",)),
    )(ent2, ctx2, params["p"], params["w"])

    return out.reshape(*lead, out_dim)


# ============================== parameters ==============================

def make_params(key, stream_size=STREAM_SIZE, output_size=STREAM_SIZE):
    # Note: output_size must equal stream_size for the (8, S) param pack
    # (true for Torso, where VectorMerge output_size == stream_size).
    assert output_size == stream_size
    k_we, k_wc, k_be, k_bc = jax.random.split(key, 4)
    scale = 1.0 / math.sqrt(stream_size)
    w_ent = jax.random.normal(k_we, (stream_size, output_size), jnp.float32) * scale
    w_ctx = jax.random.normal(k_wc, (stream_size, output_size), jnp.float32) * scale
    b_ent = jax.random.normal(k_be, (output_size,), jnp.float32) * 0.01
    b_ctx = jax.random.normal(k_bc, (output_size,), jnp.float32) * 0.01

    # Packed (8, S) param block: gamma_e, beta_e, gamma_c, beta_c, bias, 0, 0, 0
    p = jnp.stack([
        jnp.ones((stream_size,), jnp.float32),    # LN gamma (entities)
        jnp.zeros((stream_size,), jnp.float32),   # LN beta  (entities)
        jnp.ones((stream_size,), jnp.float32),    # LN gamma (context)
        jnp.zeros((stream_size,), jnp.float32),   # LN beta  (context)
        b_ent + b_ctx,                            # pre-summed bias
        jnp.zeros((stream_size,), jnp.float32),
        jnp.zeros((stream_size,), jnp.float32),
        jnp.zeros((stream_size,), jnp.float32),
    ], axis=0)

    return {
        # stacked weight, pre-cast to bf16 ONCE (MXU inputs)
        "w": jnp.concatenate([w_ent, w_ctx], axis=0).astype(jnp.bfloat16),  # (2S, S)
        "p": p,                                                              # (8, S) f32
    }


# ============================== pure-JAX reference ==============================

def reference_torso(params, entities_embedding, context_embedding,
                    use_layer_norm=True, affine_layer_norm=True):
    p = params["p"]
    ge, be, gc, bc, bias = p[0], p[1], p[2], p[3], p[4]

    def _ln(x, g, b):
        mu = jnp.mean(x, axis=-1, keepdims=True)
        var = jnp.mean(jnp.square(x - mu), axis=-1, keepdims=True)
        y = (x - mu) / jnp.sqrt(var + LN_EPS)
        return y * g + b if affine_layer_norm else y

    e = entities_embedding.astype(jnp.float32)
    c = context_embedding.astype(jnp.float32)
    if use_layer_norm:
        e = _ln(e, ge, be)
        c = _ln(c, gc, bc)
    e = jnp.maximum(e, 0.0)
    c = jnp.maximum(c, 0.0)
    w = params["w"].astype(jnp.float32)
    return jnp.concatenate([e, c], axis=-1) @ w + bias


# ============================== main ==============================

if __name__ == "__main__":
    B, T, S = 2, 8, STREAM_SIZE          # n = 16 rows -> tile 8, grid 2
    root = jax.random.PRNGKey(0)
    pkey, dkey = jax.random.split(root)
    params = make_params(pkey, S, S)

    k1, k2 = jax.random.split(dkey)
    entities_embedding = jax.random.normal(k1, (B, T, S), jnp.float32)
    context_embedding = jax.random.normal(k2, (B, T, S), jnp.float32)

    fwd = jax.jit(functools.partial(torso_forward,
                                    use_layer_norm=True, affine_layer_norm=True))
    state_embedding = jax.block_until_ready(
        fwd(params, entities_embedding, context_embedding))
    assert state_embedding.shape == (B, T, S)

    ref = reference_torso(params, entities_embedding, context_embedding)
    max_err = float(jnp.max(jnp.abs(state_embedding - ref)))
    # bf16 MXU inputs vs f32 reference -> ~1e-2-scale absolute error expected
    assert max_err < 5e-2, f"max abs err too large: {max_err}"

    print("KERNEL_OK")
</pallas_src>

<mosaic_0001>
module attributes {stable_mosaic.version = 11 : i64} {
  func.func @_torso_kernel(%arg0: i32, %arg1: memref<8x128xf32, #tpu.memory_space<vmem>>, %arg2: memref<8x128xf32, #tpu.memory_space<vmem>>, %arg3: memref<8x128xf32, #tpu.memory_space<vmem>>, %arg4: memref<256x128xbf16, #tpu.memory_space<vmem>>, %arg5: memref<8x128xf32, #tpu.memory_space<vmem>>) attributes {dimension_semantics = [#tpu.dimension_semantics<parallel>], iteration_bounds = array<i64: 2>, scalar_prefetch = 0 : i64, scratch_operands = 0 : i64, tpu.core_type = #tpu.core_type<tc>, window_params = [{transform_indices = @transform_0, window_bounds = array<i64: 8, 128>}, {transform_indices = @transform_1, window_bounds = array<i64: 8, 128>}, {pipeline_mode = #tpu.pipeline_mode<synchronous>, transform_indices = @transform_2, window_bounds = array<i64: 8, 128>}, {pipeline_mode = #tpu.pipeline_mode<synchronous>, transform_indices = @transform_3, window_bounds = array<i64: 256, 128>}, {transform_indices = @transform_4, window_bounds = array<i64: 8, 128>}]} {
    %c0 = arith.constant 0 : index
    %c0_0 = arith.constant 0 : index
    %0 = vector.load %arg1[%c0, %c0_0] : memref<8x128xf32, #tpu.memory_space<vmem>>, vector<8x128xf32>
    %c0_1 = arith.constant 0 : index
    %c0_2 = arith.constant 0 : index
    %1 = vector.load %arg2[%c0_1, %c0_2] : memref<8x128xf32, #tpu.memory_space<vmem>>, vector<8x128xf32>
    %c0_3 = arith.constant 0 : index
    %c0_4 = arith.constant 0 : index
    %2 = vector.load %arg3[%c0_3, %c0_4] : memref<8x128xf32, #tpu.memory_space<vmem>>, vector<8x128xf32>
    %3 = vector.extract_strided_slice %2 {offsets = [0, 0], sizes = [1, 128], strides = [1, 1]} : vector<8x128xf32> to vector<1x128xf32>
    %4 = vector.extract_strided_slice %2 {offsets = [1, 0], sizes = [1, 128], strides = [1, 1]} : vector<8x128xf32> to vector<1x128xf32>
    %cst = arith.constant dense<0.000000e+00> : vector<8xf32>
    %5 = vector.multi_reduction <add>, %0, %cst [1] : vector<8x128xf32> to vector<8xf32>
    %6 = vector.shape_cast %5 : vector<8xf32> to vector<8x1xf32>
    %cst_5 = arith.constant 1.280000e+02 : f32
    %7 = vector.broadcast %cst_5 : f32 to vector<8x1xf32>
    %8 = arith.divf %6, %7 : vector<8x1xf32>
    %9 = arith.mulf %0, %0 : vector<8x128xf32>
    %cst_6 = arith.constant dense<0.000000e+00> : vector<8xf32>
    %10 = vector.multi_reduction <add>, %9, %cst_6 [1] : vector<8x128xf32> to vector<8xf32>
    %11 = vector.shape_cast %10 : vector<8xf32> to vector<8x1xf32>
    %cst_7 = arith.constant 1.280000e+02 : f32
    %12 = vector.broadcast %cst_7 : f32 to vector<8x1xf32>
    %13 = arith.divf %11, %12 : vector<8x1xf32>
    %14 = arith.mulf %8, %8 : vector<8x1xf32>
    %15 = arith.subf %13, %14 : vector<8x1xf32>
    %16 = vector.broadcast %8 : vector<8x1xf32> to vector<8x128xf32>
    %17 = arith.subf %0, %16 : vector<8x128xf32>
    %cst_8 = arith.constant 9.99999974E-6 : f32
    %18 = vector.broadcast %cst_8 : f32 to vector<8x1xf32>
    %19 = arith.addf %15, %18 : vector<8x1xf32>
    %20 = math.rsqrt %19 : vector<8x1xf32>
    %21 = vector.broadcast %20 : vector<8x1xf32> to vector<8x128xf32>
    %22 = arith.mulf %17, %21 : vector<8x128xf32>
    %23 = vector.broadcast %3 : vector<1x128xf32> to vector<8x128xf32>
    %24 = arith.mulf %22, %23 : vector<8x128xf32>
    %25 = vector.broadcast %4 : vector<1x128xf32> to vector<8x128xf32>
    %26 = arith.addf %24, %25 : vector<8x128xf32>
    %27 = vector.extract_strided_slice %2 {offsets = [2, 0], sizes = [1, 128], strides = [1, 1]} : vector<8x128xf32> to vector<1x128xf32>
    %28 = vector.extract_strided_slice %2 {offsets = [3, 0], sizes = [1, 128], strides = [1, 1]} : vector<8x128xf32> to vector<1x128xf32>
    %cst_9 = arith.constant dense<0.000000e+00> : vector<8xf32>
    %29 = vector.multi_reduction <add>, %1, %cst_9 [1] : vector<8x128xf32> to vector<8xf32>
    %30 = vector.shape_cast %29 : vector<8xf32> to vector<8x1xf32>
    %cst_10 = arith.constant 1.280000e+02 : f32
    %31 = vector.broadcast %cst_10 : f32 to vector<8x1xf32>
    %32 = arith.divf %30, %31 : vector<8x1xf32>
    %33 = arith.mulf %1, %1 : vector<8x128xf32>
    %cst_11 = arith.constant dense<0.000000e+00> : vector<8xf32>
    %34 = vector.multi_reduction <add>, %33, %cst_11 [1] : vector<8x128xf32> to vector<8xf32>
    %35 = vector.shape_cast %34 : vector<8xf32> to vector<8x1xf32>
    %cst_12 = arith.constant 1.280000e+02 : f32
    %36 = vector.broadcast %cst_12 : f32 to vector<8x1xf32>
    %37 = arith.divf %35, %36 : vector<8x1xf32>
    %38 = arith.mulf %32, %32 : vector<8x1xf32>
    %39 = arith.subf %37, %38 : vector<8x1xf32>
    %40 = vector.broadcast %32 : vector<8x1xf32> to vector<8x128xf32>
    %41 = arith.subf %1, %40 : vector<8x128xf32>
    %cst_13 = arith.constant 9.99999974E-6 : f32
    %42 = vector.broadcast %cst_13 : f32 to vector<8x1xf32>
    %43 = arith.addf %39, %42 : vector<8x1xf32>
    %44 = math.rsqrt %43 : vector<8x1xf32>
    %45 = vector.broadcast %44 : vector<8x1xf32> to vector<8x128xf32>
    %46 = arith.mulf %41, %45 : vector<8x128xf32>
    %47 = vector.broadcast %27 : vector<1x128xf32> to vector<8x128xf32>
    %48 = arith.mulf %46, %47 : vector<8x128xf32>
    %49 = vector.broadcast %28 : vector<1x128xf32> to vector<8x128xf32>
    %50 = arith.addf %48, %49 : vector<8x128xf32>
    %cst_14 = arith.constant 0.000000e+00 : f32
    %51 = vector.broadcast %cst_14 : f32 to vector<8x128xf32>
    %52 = arith.maximumf %26, %51 : vector<8x128xf32>
    %cst_15 = arith.constant 0.000000e+00 : f32
    %53 = vector.broadcast %cst_15 : f32 to vector<8x128xf32>
    %54 = arith.maximumf %50, %53 : vector<8x128xf32>
    %55 = arith.truncf %52 : vector<8x128xf32> to vector<8x128xbf16>
    %c0_16 = arith.constant 0 : index
    %c0_17 = arith.constant 0 : index
    %56 = vector.load %arg4[%c0_16, %c0_17] : memref<256x128xbf16, #tpu.memory_space<vmem>>, vector<128x128xbf16>
    %cst_18 = arith.constant dense<0.000000e+00> : vector<8x128xf32>
    %57 = tpu.matmul %55, %56, %cst_18 {dimension_numbers = #tpu.dot_dimension_numbers<[1], [0], [0], [1], [0, 0, 1, 1], [], []>} : vector<8x128xbf16>, vector<128x128xbf16>, vector<8x128xf32> -> vector<8x128xf32>
    %58 = arith.truncf %54 : vector<8x128xf32> to vector<8x128xbf16>
    %c128 = arith.constant 128 : index
    %c0_19 = arith.constant 0 : index
    %59 = vector.load %arg4[%c128, %c0_19] : memref<256x128xbf16, #tpu.memory_space<vmem>>, vector<128x128xbf16>
    %cst_20 = arith.constant dense<0.000000e+00> : vector<8x128xf32>
    %60 = tpu.matmul %58, %59, %cst_20 {dimension_numbers = #tpu.dot_dimension_numbers<[1], [0], [0], [1], [0, 0, 1, 1], [], []>} : vector<8x128xbf16>, vector<128x128xbf16>, vector<8x128xf32> -> vector<8x128xf32>
    %61 = arith.addf %57, %60 : vector<8x128xf32>
    %62 = vector.extract_strided_slice %2 {offsets = [4, 0], sizes = [1, 128], strides = [1, 1]} : vector<8x128xf32> to vector<1x128xf32>
    %63 = vector.broadcast %62 : vector<1x128xf32> to vector<8x128xf32>
    %64 = arith.addf %61, %63 : vector<8x128xf32>
    %c0_21 = arith.constant 0 : index
    %c0_22 = arith.constant 0 : index
    %65 = vector.load %arg5[%c0_21, %c0_22] : memref<8x128xf32, #tpu.memory_space<vmem>>, vector<8x128xf32>
    tpu.vector_store %arg5[%c0_21, %c0_22], %64 {strides = array<i32>} : memref<8x128xf32, #tpu.memory_space<vmem>>, vector<8x128xf32>,
    return
  }
  func.func @transform_0(%arg0: i32) -> (i32, i32) {
    %c0_i32 = arith.constant 0 : i32
    %c0_i32_0 = arith.constant 0 : i32
    return %arg0, %c0_i32 : i32, i32
  }
  func.func @transform_1(%arg0: i32) -> (i32, i32) {
    %c0_i32 = arith.constant 0 : i32
    %c0_i32_0 = arith.constant 0 : i32
    return %arg0, %c0_i32 : i32, i32
  }
  func.func @transform_2(%arg0: i32) -> (i32, i32) {
    %c0_i32 = arith.constant 0 : i32
    %c0_i32_0 = arith.constant 0 : i32
    %c0_i32_1 = arith.constant 0 : i32
    return %c0_i32, %c0_i32_0 : i32, i32
  }
  func.func @transform_3(%arg0: i32) -> (i32, i32) {
    %c0_i32 = arith.constant 0 : i32
    %c0_i32_0 = arith.constant 0 : i32
    %c0_i32_1 = arith.constant 0 : i32
    return %c0_i32, %c0_i32_0 : i32, i32
  }
  func.func @transform_4(%arg0: i32) -> (i32, i32) {
    %c0_i32 = arith.constant 0 : i32
    %c0_i32_0 = arith.constant 0 : i32
    return %arg0, %c0_i32 : i32, i32
  }
}

</mosaic_0001>

<llo_original>
// kernel: torso_forward.1
$region0: #{torso_forward.1}
  #allocation0 [shape = 'u32[]', space=smem, size = 0x4, offset = 0x4, fixed_abs, tag = 'smem constant byte address 0x4 - core index']
  #allocation1 [shape = 'u32[144,128]{1,0:T(1,128)}', space=vmem, size = 0x12000, scoped, tag = 'internal scratch']
  %s0 = inlined_call_operand.hbm [shape: f32[16,128], index: 0, kind: input, shape index: {}]
  %s1 = inlined_call_operand.vmem [shape: f32[16,128], index: 1, kind: input, shape index: {}]
  %s2 = inlined_call_operand.hbm [shape: f32[8,128], index: 2, kind: input, shape index: {}]
  %s3 = inlined_call_operand.hbm [shape: bf16[256,128], index: 3, kind: input, shape index: {}]
  %s4 = inlined_call_operand.hbm [shape: f32[16,128], index: 4, kind: output, shape index: {}]
  %s5 = sld [smem:[#allocation0]]
  $region61: #{torso_forward.1} parent=0
    _
  %s7 = ssub.s32 1, %s5
  %s8 = scalar_select 0, %s7, %s5
  $region1: #{torso_forward.1} parent=0
    #allocation2 [shape = 'u8[8192]{0}', space=vmem, size = 0x2000, scoped, tag = 'input window, operand 0']
    #allocation3 [shape = 's32[2]{0}', space=sflag, size = 0x8, scoped, tag = 'scoped memory for torso_forward.1']
    #allocation4 [shape = 's32[2]{0}', space=sflag, size = 0x8, scoped, tag = 'scoped memory for torso_forward.1']
    #allocation5 [shape = 'u8[4096]{0}', space=vmem, size = 0x1000, scoped, tag = 'input window, operand 2, single buffered']
    #allocation6 [shape = 's32[1]{0}', space=sflag, size = 0x4, scoped, tag = 'scoped memory for torso_forward.1']
    #allocation7 [shape = 'u8[65536]{0}', space=vmem, size = 0x10000, scoped, tag = 'input window, operand 3, single buffered']
    #allocation8 [shape = 'u8[8192]{0}', space=vmem, size = 0x2000, scoped, tag = 'output window, operand 0']
    %9 = vsyncpa [#allocation3], 0
    %s10 = scalar_lea.sflag [#allocation3], 1
    %11 = vsyncpa %s10, 0
    %12 = vsyncpa [#allocation6], 0
    %13 = vsyncpa [#allocation4], 0
    %s14 = scalar_lea.sflag [#allocation4], 1
    %15 = vsyncpa %s14, 0
    loop: start=0, step=1, limit=4
    $region2: #{torso_forward.1} parent=1 // loop_pre_header
      _
    $region3: #{torso_forward.1} parent=1 // loop_header
      %s17 = sphi 0, %s21
      %p18 = scmp.ge.s32.totalorder %s17, 4
      %s27 = sphi 0, %s29
      %s30 = sphi 0, %s27
      %s31 = sphi 0, %s30
      %s47 = sphi 0, %s31
      %s53 = sphi 0, %s55
      %s56 = sphi 0, %s53
      %s57 = sphi 0, %s56
      %s73 = sphi 0, %s57
      %s77 = sphi 0, %s77
      %s79 = sphi 0, %s77
      %s80 = sphi 0, %s79
      %s94 = sphi 0, %s80
      %s98 = sphi 0, %s98
      %s100 = sphi 0, %s98
      %s101 = sphi 0, %s100
      %s115 = sphi 0, %s101
      %s121 = sphi 0, %s123
      %s124 = sphi 0, %s121
      %s125 = sphi 0, %s124
      %s141 = sphi 0, %s125
    $region4: #{torso_forward.1} parent=1 // loop_header_branch
      %20 = sbr.rel (%p18) target = $region8
    $region5: #{torso_forward.1} parent=1 // loop_body
      %s22 = ssub.s32 %s17, 1
      %s23 = ssub.s32 %s17, 2
      %s24 = sadd.s32 %s17, 1
      %s25 = ssub.s32 %s17, %s24
      %p26 = scmp.eq.s32.totalorder %s25, 0
      %s28 = sadd.s32 %s27, 1
      %s29 = scalar_select %p26, %s27, %s28
      %p32 = pneg %p26
      %p33 = scmp.eq.s32.totalorder %s17, 1
      %p34 = por %p32, %p33
      %p35 = scmp.ne.s32.totalorder %s27, %s30
      %p36 = scmp.eq.s32.totalorder %s17, 0
      %p37 = por %p35, %p36
      %p38 = scmp.ne.s32.totalorder %s27, %s30
      %p39 = scmp.eq.s32.totalorder %s22, 1
      %p40 = por %p38, %p39
      %p41 = scmp.ne.s32.totalorder %s30, %s31
      %p42 = scmp.eq.s32.totalorder %s22, 0
      %p43 = por %p41, %p42
      %p44 = scmp.ne.s32.totalorder %s30, %s31
      %p45 = scmp.eq.s32.totalorder %s23, 1
      %p46 = por %p44, %p45
      %p48 = scmp.ne.s32.totalorder %s31, %s47
      %p49 = scmp.eq.s32.totalorder %s23, 0
      %p50 = por %p48, %p49
      %s51 = ssub.s32 %s17, %s24
      %p52 = scmp.eq.s32.totalorder %s51, 0
      %s54 = sadd.s32 %s53, 1
      %s55 = scalar_select %p52, %s53, %s54
      %p58 = pneg %p52
      %p59 = scmp.eq.s32.totalorder %s17, 1
      %p60 = por %p58, %p59
      %p61 = scmp.ne.s32.totalorder %s53, %s56
      %p62 = scmp.eq.s32.totalorder %s17, 0
      %p63 = por %p61, %p62
      %p64 = scmp.ne.s32.totalorder %s53, %s56
      %p65 = scmp.eq.s32.totalorder %s22, 1
      %p66 = por %p64, %p65
      %p67 = scmp.ne.s32.totalorder %s56, %s57
      %p68 = scmp.eq.s32.totalorder %s22, 0
      %p69 = por %p67, %p68
      %p70 = scmp.ne.s32.totalorder %s56, %s57
      %p71 = scmp.eq.s32.totalorder %s23, 1
      %p72 = por %p70, %p71
      %p74 = scmp.ne.s32.totalorder %s57, %s73
      %p75 = scmp.eq.s32.totalorder %s23, 0
      %p76 = por %p74, %p75
      %s78 = sadd.s32 %s77, 1
      %p81 = scmp.eq.s32.totalorder %s17, 1
      %p82 = scmp.ne.s32.totalorder %s77, %s79
      %p83 = scmp.eq.s32.totalorder %s17, 0
      %p84 = por %p82, %p83
      %p85 = scmp.ne.s32.totalorder %s77, %s79
      %p86 = scmp.eq.s32.totalorder %s22, 1
      %p87 = por %p85, %p86
      %p88 = scmp.ne.s32.totalorder %s79, %s80
      %p89 = scmp.eq.s32.totalorder %s22, 0
      %p90 = por %p88, %p89
      %p91 = scmp.ne.s32.totalorder %s79, %s80
      %p92 = scmp.eq.s32.totalorder %s23, 1
      %p93 = por %p91, %p92
      %p95 = scmp.ne.s32.totalorder %s80, %s94
      %p96 = scmp.eq.s32.totalorder %s23, 0
      %p97 = por %p95, %p96
      %s99 = sadd.s32 %s98, 1
      %p102 = scmp.eq.s32.totalorder %s17, 1
      %p103 = scmp.ne.s32.totalorder %s98, %s100
      %p104 = scmp.eq.s32.totalorder %s17, 0
      %p105 = por %p103, %p104
      %p106 = scmp.ne.s32.totalorder %s98, %s100
      %p107 = scmp.eq.s32.totalorder %s22, 1
      %p108 = por %p106, %p107
      %p109 = scmp.ne.s32.totalorder %s100, %s101
      %p110 = scmp.eq.s32.totalorder %s22, 0
      %p111 = por %p109, %p110
      %p112 = scmp.ne.s32.totalorder %s100, %s101
      %p113 = scmp.eq.s32.totalorder %s23, 1
      %p114 = por %p112, %p113
      %p116 = scmp.ne.s32.totalorder %s101, %s115
      %p117 = scmp.eq.s32.totalorder %s23, 0
      %p118 = por %p116, %p117
      %s119 = ssub.s32 %s17, %s24
      %p120 = scmp.eq.s32.totalorder %s119, 0
      %s122 = sadd.s32 %s121, 1
      %s123 = scalar_select %p120, %s121, %s122
      %p126 = pneg %p120
      %p127 = scmp.eq.s32.totalorder %s17, 1
      %p128 = por %p126, %p127
      %p129 = scmp.ne.s32.totalorder %s121, %s124
      %p130 = scmp.eq.s32.totalorder %s17, 0
      %p131 = por %p129, %p130
      %p132 = scmp.ne.s32.totalorder %s121, %s124
      %p133 = scmp.eq.s32.totalorder %s22, 1
      %p134 = por %p132, %p133
      %p135 = scmp.ne.s32.totalorder %s124, %s125
      %p136 = scmp.eq.s32.totalorder %s22, 0
      %p137 = por %p135, %p136
      %p138 = scmp.ne.s32.totalorder %s124, %s125
      %p139 = scmp.eq.s32.totalorder %s23, 1
      %p140 = por %p138, %p139
      %p142 = scmp.ne.s32.totalorder %s125, %s141
      %p143 = scmp.eq.s32.totalorder %s23, 0
      %p144 = por %p142, %p143
      %p145 = scmp.le.s32.totalorder 1, %s17
      %p146 = scmp.lt.s32.totalorder %s17, 3
      %p147 = pnand %p145, %p146
      %p148 = pneg %p147
      // Predicated region
      $region9: #{torso_forward.1} parent=5 // pred_check
        _
      $region10: #{torso_forward.1} parent=5 // pred_check_branch
        %150 = sbr.rel (%p147) target = $region12
      $region11: #{torso_forward.1} parent=5 // pred_region
        %s151 = ssub.s32 %s17, 1
        // Predicated region
        $region13: #{torso_forward.1} parent=11 // pred_check
          %p152 = pneg %p90
        $region14: #{torso_forward.1} parent=11 // pred_check_branch
          %154 = sbr.rel (%p152) target = $region16
        $region15: #{torso_forward.1} parent=11 // pred_region
          %s156 = ssub.s32 128, 128
          %157 = vsyncadd [#allocation6], %s156
          %s159 = sshll.u32 [#allocation5], 4
          %s160 = int_to_ptr.vmem [resolvable:$true] %s159
          %162 = dma.hbm_to_vmem [thread:$0]  %s2, 128, %s160, [#allocation6]
        $region16: #{torso_forward.1} parent=11 // pred_fallthru
          _
        // Predicated region
        $region17: #{torso_forward.1} parent=11 // pred_check
          %p163 = pneg %p111
        $region18: #{torso_forward.1} parent=11 // pred_check_branch
          %165 = sbr.rel (%p163) target = $region20
        $region19: #{torso_forward.1} parent=11 // pred_region
          %s167 = ssub.s32 2048, 2048
          %168 = vsyncadd [#allocation6], %s167
          %s169 = sshll.u32 [#allocation7], 4
          %s170 = int_to_ptr.vmem [resolvable:$true] %s169
          %175 = dma.hbm_to_vmem [thread:$0]  %s3, 2048, %s170, [#allocation6], 64, 64, 4
        $region20: #{torso_forward.1} parent=11 // pred_fallthru
          _
      $region12: #{torso_forward.1} parent=5 // pred_fallthru
        _
      %p176 = scmp.lt.s32.totalorder %s17, 2
      // Predicated region
      $region21: #{torso_forward.1} parent=5 // pred_check
        %p177 = pneg %p176
      $region22: #{torso_forward.1} parent=5 // pred_check_branch
        %179 = sbr.rel (%p177) target = $region24
      $region23: #{torso_forward.1} parent=5 // pred_region
        // Predicated region
        $region25: #{torso_forward.1} parent=23 // pred_check
          %p180 = pneg %p37
        $region26: #{torso_forward.1} parent=23 // pred_check_branch
          %182 = sbr.rel (%p180) target = $region28
        $region27: #{torso_forward.1} parent=23 // pred_region
          %s183 = sand.u32 %s27, 1
          %s184 = scalar_lea.sflag [#allocation3], %s183
          %s185 = sand.u32 %s27, 1
          %s186 = smul.addr %s185, 8
          %s187 = scalar_lea.vmem [#allocation2], %s186
          %s189 = ssub.s32 128, 128
          %190 = vsyncadd %s184, %s189
          %s191 = smul.addr %s17, 128
          %s192 = scalar_lea.hbm %s0, %s191
          %s194 = sshll.u32 %s187, 4
          %s195 = int_to_ptr.vmem [resolvable:$true] %s194
          %197 = dma.hbm_to_vmem [thread:$0]  %s192, 128, %s195, %s184
        $region28: #{torso_forward.1} parent=23 // pred_fallthru
          _
        // Predicated region
        $region29: #{torso_forward.1} parent=23 // pred_check
          %p198 = pneg %p63
        $region30: #{torso_forward.1} parent=23 // pred_check_branch
          %200 = sbr.rel (%p198) target = $region32
        $region31: #{torso_forward.1} parent=23 // pred_region
          %p201 = scmp.lt.s32.totalorder %s17, 1
          %s202 = scalar_select %p201, %s17, 1
          %s203 = smul.addr %s202, 8
          %s204 = scalar_lea.vmem %s1, %s203
        $region32: #{torso_forward.1} parent=23 // pred_fallthru
          _
      $region24: #{torso_forward.1} parent=5 // pred_fallthru
        _
      %p205 = scmp.le.s32.totalorder 1, %s17
      %p206 = scmp.lt.s32.totalorder %s17, 3
      %p207 = pnand %p205, %p206
      %p208 = pneg %p207
      // Predicated region
      $region33: #{torso_forward.1} parent=5 // pred_check
        _
      $region34: #{torso_forward.1} parent=5 // pred_check_branch
        %210 = sbr.rel (%p207) target = $region36
      $region35: #{torso_forward.1} parent=5 // pred_region
        %s211 = ssub.s32 %s17, 1
        %s212 = sand.u32 %s30, 1
        %s213 = scalar_lea.sflag [#allocation3], %s212
        %s214 = sand.u32 %s30, 1
        %s215 = smul.addr %s214, 8
        %s216 = scalar_lea.vmem [#allocation2], %s215
        // Predicated region
        $region37: #{torso_forward.1} parent=35 // pred_check
          %p217 = pneg %p43
        $region38: #{torso_forward.1} parent=35 // pred_check_branch
          %219 = sbr.rel (%p217) target = $region40
        $region39: #{torso_forward.1} parent=35 // pred_region
          %220 = dma.done %s213, 128
        $region40: #{torso_forward.1} parent=35 // pred_fallthru
          _
        // Predicated region
        $region41: #{torso_forward.1} parent=35 // pred_check
          %p221 = pneg %p90
        $region42: #{torso_forward.1} parent=35 // pred_check_branch
          %223 = sbr.rel (%p221) target = $region44
        $region43: #{torso_forward.1} parent=35 // pred_region
          %224 = dma.done [#allocation6], 128
        $region44: #{torso_forward.1} parent=35 // pred_fallthru
          _
        // Predicated region
        $region45: #{torso_forward.1} parent=35 // pred_check
          %p225 = pneg %p111
        $region46: #{torso_forward.1} parent=35 // pred_check_branch
          %227 = sbr.rel (%p225) target = $region48
        $region47: #{torso_forward.1} parent=35 // pred_region
          %228 = dma.done [#allocation6], 2048
        $region48: #{torso_forward.1} parent=35 // pred_fallthru
          _
        %s229 = sand.u32 %s30, 1
        %s230 = scalar_lea.sflag [#allocation3], %s229
        %s231 = sand.u32 %s30, 1
        %s232 = smul.addr %s231, 8
        %s233 = scalar_lea.vmem [#allocation2], %s232
        %p234 = pneg %p43
        %p235 = pneg %p40
        %p236 = scmp.lt.s32.totalorder %s22, 1
        %s237 = scalar_select %p236, %s22, 1
        %s238 = smul.addr %s237, 8
        %s239 = scalar_lea.vmem %s1, %s238
        %p240 = pneg %p69
        %p241 = pneg %p66
        %p242 = pneg %p90
        %p243 = pneg %p87
        %p244 = pneg %p111
        %p245 = pneg %p108
        %p246 = pneg %p137
        %p247 = pneg %p134
        %s248 = sand.u32 %s124, 1
        %s249 = scalar_lea.sflag [#allocation4], %s248
        %s250 = sand.u32 %s124, 1
        %s251 = smul.addr %s250, 8
        %s252 = scalar_lea.vmem [#allocation8], %s251
        %p253 = scmp.lt.s32.totalorder %s22, 1
        %s254 = scalar_select %p253, %s22, 1
        %s255 = smul.addr %s254, 8
        %s256 = scalar_lea.vmem %s1, %s255
        %v258 = vld [vmem:[%s216] sm:$0xff]
        %v259 = vld [vmem:[%s256] sm:$0xff]
        %v260 = vld [vmem:[#allocation5] sm:$0xff]
        %261 = vadd.xlane.f32.xlu0 %v258
        %v262 = vpop.xlane.xlu0 %261
        %v263 = vrcp.pop 128.0
        %v264 = vmul.f32 %v262, %v263
        %v265 = vmul.f32 %v258, %v258
        %266 = vadd.xlane.f32.xlu0 %v265
        %v267 = vpop.xlane.xlu0 %266
        %v268 = vmul.f32 %v267, %v263
        %v269 = vmul.f32 %v264, %v264
        %v270 = vsub.f32 %v268, %v269
        %v271 = vsub.f32 %v258, %v264
        %v272 = vadd.f32 %v270, 1e-05
        %v273 = vrsqrt.pop %v272
        %v274 = vmul.f32 %v271, %v273
        %v275 = vlaneseq
        %v276 = vshrl.u32 %v275, 7
        %v277 = vsub.s32 0, %v276
        %v278 = vrot.slane %v260, %v277
        %v279 = vmul.f32 %v274, %v278
        %v280 = vlaneseq
        %v281 = vshrl.u32 %v280, 7
        %v282 = vsub.s32 1, %v281
        %v283 = vrot.slane %v260, %v282
        %v284 = vadd.f32 %v279, %v283
        %285 = vadd.xlane.f32.xlu0 %v259
        %v286 = vpop.xlane.xlu0 %285
        %v287 = vmul.f32 %v286, %v263
        %v288 = vmul.f32 %v259, %v259
        %289 = vadd.xlane.f32.xlu0 %v288
        %v290 = vpop.xlane.xlu0 %289
        %v291 = vmul.f32 %v290, %v263
        %v292 = vmul.f32 %v287, %v287
        %v293 = vsub.f32 %v291, %v292
        %v294 = vsub.f32 %v259, %v287
        %v295 = vadd.f32 %v293, 1e-05
        %v296 = vrsqrt.pop %v295
        %v297 = vmul.f32 %v294, %v296
        %v298 = vlaneseq
        %v299 = vshrl.u32 %v298, 7
        %v300 = vsub.s32 2, %v299
        %v301 = vrot.slane %v260, %v300
        %v302 = vmul.f32 %v297, %v301
        %v303 = vlaneseq
        %v304 = vshrl.u32 %v303, 7
        %v305 = vsub.s32 3, %v304
        %v306 = vrot.slane %v260, %v305
        %v307 = vadd.f32 %v302, %v306
        %v308 = vmax.f32 %v284, 0.0
        %v309 = vmax.f32 %v307, 0.0
        %v310 = vpack.c.bf16 %v308, %v308
        %v311 = vld [vmem:[#allocation7] sm:$0xf]
        %v312 = vld [vmem:[#allocation7 + $0x4] sm:$0xf]
        %v313 = vld [vmem:[#allocation7 + $0x8] sm:$0xf]
        %v314 = vld [vmem:[#allocation7 + $0xc] sm:$0xf]
        %v315 = vld [vmem:[#allocation7 + $0x10] sm:$0xf]
        %v316 = vld [vmem:[#allocation7 + $0x14] sm:$0xf]
        %v317 = vld [vmem:[#allocation7 + $0x18] sm:$0xf]
        %v318 = vld [vmem:[#allocation7 + $0x1c] sm:$0xf]
        %v319 = vld [vmem:[#allocation7 + $0x20] sm:$0xf]
        %v320 = vld [vmem:[#allocation7 + $0x24] sm:$0xf]
        %v321 = vld [vmem:[#allocation7 + $0x28] sm:$0xf]
        %v322 = vld [vmem:[#allocation7 + $0x2c] sm:$0xf]
        %v323 = vld [vmem:[#allocation7 + $0x30] sm:$0xf]
        %v324 = vld [vmem:[#allocation7 + $0x34] sm:$0xf]
        %v325 = vld [vmem:[#allocation7 + $0x38] sm:$0xf]
        %v326 = vld [vmem:[#allocation7 + $0x3c] sm:$0xf]
        %v327 = vpack.c.bf16 %v309, %v309
        %v328 = vld [vmem:[#allocation7 + $0x40] sm:$0xf]
        %v329 = vld [vmem:[#allocation7 + $0x44] sm:$0xf]
        %v330 = vld [vmem:[#allocation7 + $0x48] sm:$0xf]
        %v331 = vld [vmem:[#allocation7 + $0x4c] sm:$0xf]
        %v332 = vld [vmem:[#allocation7 + $0x50] sm:$0xf]
        %v333 = vld [vmem:[#allocation7 + $0x54] sm:$0xf]
        %v334 = vld [vmem:[#allocation7 + $0x58] sm:$0xf]
        %v335 = vld [vmem:[#allocation7 + $0x5c] sm:$0xf]
        %v336 = vld [vmem:[#allocation7 + $0x60] sm:$0xf]
        %v337 = vld [vmem:[#allocation7 + $0x64] sm:$0xf]
        %v338 = vld [vmem:[#allocation7 + $0x68] sm:$0xf]
        %v339 = vld [vmem:[#allocation7 + $0x6c] sm:$0xf]
        %v340 = vld [vmem:[#allocation7 + $0x70] sm:$0xf]
        %v341 = vld [vmem:[#allocation7 + $0x74] sm:$0xf]
        %v342 = vld [vmem:[#allocation7 + $0x78] sm:$0xf]
        %v343 = vld [vmem:[#allocation7 + $0x7c] sm:$0xf]
        %v360 = vunpack.c.l.b16 %v328
        %v361 = vunpack.c.l.b16 %v329
        %v362 = vunpack.c.l.b16 %v330
        %v363 = vunpack.c.l.b16 %v331
        %v364 = vunpack.c.l.b16 %v332
        %v365 = vunpack.c.l.b16 %v333
        %v366 = vunpack.c.l.b16 %v334
        %v367 = vunpack.c.l.b16 %v335
        %v368 = vunpack.c.l.b16 %v336
        %v369 = vunpack.c.l.b16 %v337
        %v370 = vunpack.c.l.b16 %v338
        %v371 = vunpack.c.l.b16 %v339
        %v372 = vunpack.c.l.b16 %v340
        %v373 = vunpack.c.l.b16 %v341
        %v374 = vunpack.c.l.b16 %v342
        %v375 = vunpack.c.l.b16 %v343
        %v376 = vpack.c.b16 %v361, %v360
        %v377 = vpack.c.b16 %v363, %v362
        %v378 = vpack.c.b16 %v365, %v364
        %v379 = vpack.c.b16 %v367, %v366
        %v380 = vpack.c.b16 %v369, %v368
        %v381 = vpack.c.b16 %v371, %v370
        %v382 = vpack.c.b16 %v373, %v372
        %v383 = vpack.c.b16 %v375, %v374
        %392 = vmatprep.subr.bf16.mxu0 0
        %393 = vmatpush1.bf16.msra.mxu0 %v376
        %394 = vmatprep.subr.bf16.mxu0 0
        %395 = vmatpush1.bf16.msra.mxu0 %v377
        %396 = vmatprep.subr.bf16.mxu0 0
        %397 = vmatpush1.bf16.msra.mxu0 %v378
        %398 = vmatprep.subr.bf16.mxu0 0
        %399 = vmatpush1.bf16.msra.mxu0 %v379
        %400 = vmatprep.subr.bf16.mxu0 0
        %401 = vmatpush1.bf16.msra.mxu0 %v380
        %402 = vmatprep.subr.bf16.mxu0 0
        %403 = vmatpush1.bf16.msra.mxu0 %v381
        %404 = vmatprep.subr.bf16.mxu0 0
        %405 = vmatpush1.bf16.msra.mxu0 %v382
        %406 = vmatprep.subr.bf16.mxu0 0
        %407 = vmatpush1.bf16.msra.mxu0 %v383
        %408 = vmatprep.subr.bf16.mxu0 0
        %409 = vmatpush1.bf16.msra.mxu0 0
        %410 = vmatprep.subr.bf16.mxu0 0
        %411 = vmatpush1.bf16.msra.mxu0 0
        %412 = vmatprep.subr.bf16.mxu0 0
        %413 = vmatpush1.bf16.msra.mxu0 0
        %414 = vmatprep.subr.bf16.mxu0 0
        %415 = vmatpush1.bf16.msra.mxu0 0
        %416 = vmatprep.subr.bf16.mxu0 0
        %417 = vmatpush1.bf16.msra.mxu0 0
        %418 = vmatprep.subr.bf16.mxu0 0
        %419 = vmatpush1.bf16.msra.mxu0 0
        %420 = vmatprep.subr.bf16.mxu0 0
        %421 = vmatpush1.bf16.msra.mxu0 0
        %422 = vmatprep.subr.bf16.mxu0 0
        %423 = vmatpush1.bf16.msra.mxu0 0
        %424 = vmatprep.mubr.bf16.mxu0 0
        %425 = vmatmul.mubr.bf16.gmra.mrb[0].mxu0 %v327
        %v426 = vpop.f32.mrb[0].mxu0
        %v427 = vadd.f32 0.0, %v426
        %v428 = vpop.f32.mrb[0].mxu0
        %v429 = vpop.f32.mrb[0].mxu0
        %v430 = vpop.f32.mrb[0].mxu0
        %431 = vdwg.mxu0
        %v448 = vunpack.c.l.b16 %v311
        %v449 = vunpack.c.l.b16 %v312
        %v450 = vunpack.c.l.b16 %v313
        %v451 = vunpack.c.l.b16 %v314
        %v452 = vunpack.c.l.b16 %v315
        %v453 = vunpack.c.l.b16 %v316
        %v454 = vunpack.c.l.b16 %v317
        %v455 = vunpack.c.l.b16 %v318
        %v456 = vunpack.c.l.b16 %v319
        %v457 = vunpack.c.l.b16 %v320
        %v458 = vunpack.c.l.b16 %v321
        %v459 = vunpack.c.l.b16 %v322
        %v460 = vunpack.c.l.b16 %v323
        %v461 = vunpack.c.l.b16 %v324
        %v462 = vunpack.c.l.b16 %v325
        %v463 = vunpack.c.l.b16 %v326
        %v464 = vpack.c.b16 %v449, %v448
        %v465 = vpack.c.b16 %v451, %v450
        %v466 = vpack.c.b16 %v453, %v452
        %v467 = vpack.c.b16 %v455, %v454
        %v468 = vpack.c.b16 %v457, %v456
        %v469 = vpack.c.b16 %v459, %v458
        %v470 = vpack.c.b16 %v461, %v460
        %v471 = vpack.c.b16 %v463, %v462
        %480 = vmatprep.subr.bf16.mxu0 0
        %481 = vmatpush1.bf16.msra.mxu0 %v464
        %482 = vmatprep.subr.bf16.mxu0 0
        %483 = vmatpush1.bf16.msra.mxu0 %v465
        %484 = vmatprep.subr.bf16.mxu0 0
        %485 = vmatpush1.bf16.msra.mxu0 %v466
        %486 = vmatprep.subr.bf16.mxu0 0
        %487 = vmatpush1.bf16.msra.mxu0 %v467
        %488 = vmatprep.subr.bf16.mxu0 0
        %489 = vmatpush1.bf16.msra.mxu0 %v468
        %490 = vmatprep.subr.bf16.mxu0 0
        %491 = vmatpush1.bf16.msra.mxu0 %v469
        %492 = vmatprep.subr.bf16.mxu0 0
        %493 = vmatpush1.bf16.msra.mxu0 %v470
        %494 = vmatprep.subr.bf16.mxu0 0
        %495 = vmatpush1.bf16.msra.mxu0 %v471
        %496 = vmatprep.subr.bf16.mxu0 0
        %497 = vmatpush1.bf16.msra.mxu0 0
        %498 = vmatprep.subr.bf16.mxu0 0
        %499 = vmatpush1.bf16.msra.mxu0 0
        %500 = vmatprep.subr.bf16.mxu0 0
        %501 = vmatpush1.bf16.msra.mxu0 0
        %502 = vmatprep.subr.bf16.mxu0 0
        %503 = vmatpush1.bf16.msra.mxu0 0
        %504 = vmatprep.subr.bf16.mxu0 0
        %505 = vmatpush1.bf16.msra.mxu0 0
        %506 = vmatprep.subr.bf16.mxu0 0
        %507 = vmatpush1.bf16.msra.mxu0 0
        %508 = vmatprep.subr.bf16.mxu0 0
        %509 = vmatpush1.bf16.msra.mxu0 0
        %510 = vmatprep.subr.bf16.mxu0 0
        %511 = vmatpush1.bf16.msra.mxu0 0
        %512 = vmatprep.mubr.bf16.mxu0 0
        %513 = vmatmul.mubr.bf16.gmra.mrb[0].mxu0 %v310
        %v514 = vpop.f32.mrb[0].mxu0
        %v515 = vadd.f32 %v427, %v514
        %v516 = vpop.f32.mrb[0].mxu0
        %v517 = vpop.f32.mrb[0].mxu0
        %v518 = vpop.f32.mrb[0].mxu0
        %519 = vdwg.mxu0
        %v520 = vlaneseq
        %v521 = vshrl.u32 %v520, 7
        %v522 = vsub.s32 4, %v521
        %v523 = vrot.slane %v260, %v522
        %v524 = vadd.f32 %v515, %v523
        %525 = vst [vmem:[%s252] sm:$0xff] %v524
        %s526 = sand.u32 %s124, 1
        %s527 = scalar_lea.sflag [#allocation4], %s526
        %s528 = sand.u32 %s124, 1
        %s529 = smul.addr %s528, 8
        %s530 = scalar_lea.vmem [#allocation8], %s529
        // Predicated region
        $region49: #{torso_forward.1} parent=35 // pred_check
          %p531 = pneg %p134
        $region50: #{torso_forward.1} parent=35 // pred_check_branch
          %533 = sbr.rel (%p531) target = $region52
        $region51: #{torso_forward.1} parent=35 // pred_region
          %s535 = ssub.s32 128, 128
          %536 = vsyncadd %s527, %s535
          %s537 = smul.addr %s22, 128
          %s538 = scalar_lea.hbm %s4, %s537
          %s540 = sshll.u32 %s530, 4
          %s541 = int_to_ptr.vmem [resolvable:$true] %s540
          %543 = dma.vmem_to_hbm [thread:$0]  %s541, 128, %s538, %s527
        $region52: #{torso_forward.1} parent=35 // pred_fallthru
          _
      $region36: #{torso_forward.1} parent=5 // pred_fallthru
        _
      %p544 = scmp.le.s32.totalorder 2, %s17
      // Predicated region
      $region53: #{torso_forward.1} parent=5 // pred_check
        %p545 = pneg %p544
      $region54: #{torso_forward.1} parent=5 // pred_check_branch
        %547 = sbr.rel (%p545) target = $region56
      $region55: #{torso_forward.1} parent=5 // pred_region
        %s548 = ssub.s32 %s17, 2
        // Predicated region
        $region57: #{torso_forward.1} parent=55 // pred_check
          %p549 = pneg %p140
        $region58: #{torso_forward.1} parent=55 // pred_check_branch
          %551 = sbr.rel (%p549) target = $region60
        $region59: #{torso_forward.1} parent=55 // pred_region
          %s552 = sand.u32 %s125, 1
          %s553 = scalar_lea.sflag [#allocation4], %s552
          %s554 = sand.u32 %s125, 1
          %s555 = smul.addr %s554, 8
          %s556 = scalar_lea.vmem [#allocation8], %s555
          %557 = dma.done %s553, 128
        $region60: #{torso_forward.1} parent=55 // pred_fallthru
          _
      $region56: #{torso_forward.1} parent=5 // pred_fallthru
        _
    $region6: #{torso_forward.1} parent=1 // loop_footer
      %s21 = sadd.s32 1, %s17
    $region7: #{torso_forward.1} parent=1 // loop_footer_branch
      %16 = sbr.rel target = $region3
    $region8: #{torso_forward.1} parent=1 // loop_exit
      _
    %558 = vsyncpa [#allocation3], 1
    %s559 = scalar_lea.sflag [#allocation3], 1
    %560 = vsyncpa %s559, 1
    %561 = vsyncpa [#allocation6], 1
    %562 = vsyncpa [#allocation4], 1
    %s563 = scalar_lea.sflag [#allocation4], 1
    %564 = vsyncpa %s563, 1

</llo_original>
